<compile_context>
chip_gen: v5e
topology: v5e:2x2
jax: 0.10.0
libtpu: 0.0.40
codegen_flags: <defaults>
</compile_context>

<pallas_src>
import functools

import jax
import jax.numpy as jnp
from jax import lax
from jax.experimental import pallas as pl
from jax.experimental.pallas import tpu as pltpu

LANE = 128
SUBLANE = 8
_NEG_BIG = -1e30            # finite pad for multi-class logits: exp() -> 0, no inf*0
_DEFAULT_TILE_ROWS = 512    # >=512-row tiles reach ~85% of HBM roofline
_TILE_BYTES_CAP = 2 * 1024 * 1024  # per-buffer cap; keeps 2-deep pipelining on v7x


def _round_up(x, m):
    return (x + m - 1) // m * m


def _choose_row_tiling(rows, lane_w, max_tile_rows):
    """Pick (tile_rows, padded_rows): tile multiple of 8, divides padded_rows."""
    rows8 = _round_up(max(rows, 1), SUBLANE)
    cap = max(SUBLANE, (_TILE_BYTES_CAP // (lane_w * 4)) // SUBLANE * SUBLANE)
    tile = max(SUBLANE, min(_round_up(max_tile_rows, SUBLANE), cap))
    if rows8 <= tile:
        return rows8, rows8
    return tile, _round_up(rows, tile)


def _pad2d(a, rows_pad, cols_pad, value=0):
    r, c = a.shape
    if r == rows_pad and c == cols_pad:
        return a
    return jnp.pad(a, ((0, rows_pad - r), (0, cols_pad - c)),
                   constant_values=value)


def _focal_weight(one_minus_pt, gamma):
    """(1 - p_t) ** gamma. Integer gamma -> VPU multiply chain (no EUP pow)."""
    g_int = int(gamma)
    if float(g_int) == float(gamma) and 0 <= g_int <= 8:
        if g_int == 0:
            return jnp.ones_like(one_minus_pt)
        w = one_minus_pt
        for _ in range(g_int - 1):
            w = w * one_minus_pt
        return w
    # Non-integer gamma: clamp the base so rounding can't make it negative.
    return jnp.maximum(one_minus_pt, 0.0) ** gamma


# ----------------------------------------------------------------------------
# Kernels
# ----------------------------------------------------------------------------
def _sigmoid_focal_kernel(x_ref, t_ref, out_ref, *, gamma, alpha, reduction,
                          tile_rows, lane_w, flat_count, valid_rows,
                          valid_cols, needs_mask, scale):
    """Shared kernel for 'binary' and 'multi-label' focal loss (one row tile)."""
    x = x_ref[...].astype(jnp.float32)
    t = t_ref[...].astype(jnp.float32)

    # One shared transcendental: e = exp(-|x|) serves both sigmoid and BCE.
    e = jnp.exp(-jnp.abs(x))
    inv_1pe = pl.reciprocal(1.0 + e)
    sig = jnp.where(x >= 0.0, inv_1pe, e * inv_1pe)          # sigmoid(x)
    # binary_cross_entropy_with_logits: max(x,0) - x*t + log1p(exp(-|x|))
    bce = jnp.maximum(x, 0.0) - x * t + jnp.log1p(e)

    p_t = sig * t + (1.0 - sig) * (1.0 - t)
    focal_w = _focal_weight(1.0 - p_t, gamma)

    if alpha is not None:
        bce = (alpha * t + (1.0 - alpha) * (1.0 - t)) * bce

    loss = focal_w * bce

    if reduction == "none":
        out_ref[...] = loss.astype(out_ref.dtype)
        return

    # --- scalar-reduction path: accumulate into the resident SMEM output ---
    if needs_mask:
        row0 = pl.program_id(0) * tile_rows
        rows = lax.broadcasted_iota(jnp.int32, (tile_rows, lane_w), 0) + row0
        cols = lax.broadcasted_iota(jnp.int32, (tile_rows, lane_w), 1)
        if flat_count is not None:                 # flattened binary layout
            mask = (rows * lane_w + cols) < flat_count
        else:                                      # rectangular (B, C) layout
            mask = (rows < valid_rows) & (cols < valid_cols)
        loss = jnp.where(mask, loss, 0.0)

    part = jnp.sum(loss)

    @pl.when(pl.program_id(0) == 0)
    def _init():
        out_ref[0, 0] = jnp.float32(0.0)

    out_ref[0, 0] += part

    if scale != 1.0:  # 'mean': divide by the true (unpadded) element count
        @pl.when(pl.program_id(0) == pl.num_programs(0) - 1)
        def _finalize():
            out_ref[0, 0] = out_ref[0, 0] * jnp.float32(scale)


def _multiclass_focal_kernel(*refs, gamma, use_alpha, reduction, scale):
    """Multi-class focal loss (softmax CE with focal modulation), one row tile."""
    if use_alpha:
        x_ref, t_ref, a_ref = refs[0], refs[1], refs[2]
        out_ref = refs[3]
    else:
        x_ref, t_ref = refs[0], refs[1]
        a_ref = None
        out_ref = refs[2]

    x = x_ref[...].astype(jnp.float32)   # (tile, Cp); padded entries = -1e30
    t = t_ref[...].astype(jnp.float32)   # padded entries = 0

    # log-softmax directly (finite everywhere; no log(0) -> NaN hazard)
    m = jnp.max(x, axis=1, keepdims=True)
    ex = jnp.exp(x - m)
    sum_e = jnp.sum(ex, axis=1, keepdims=True)       # >= 1
    logp = (x - m) - jnp.log(sum_e)
    ce = -t * logp                                   # 0 in all padded slots
    p_t = jnp.sum(ex * t, axis=1, keepdims=True) * pl.reciprocal(sum_e)
    focal_w = _focal_weight(1.0 - p_t, gamma)

    if use_alpha:
        alpha_row = a_ref[...].astype(jnp.float32)            # (1, Cp)
        alpha_t = jnp.sum(alpha_row * t, axis=1, keepdims=True)
        ce = alpha_t * ce

    loss = focal_w * ce

    if reduction == "none":
        out_ref[...] = loss.astype(out_ref.dtype)
        return

    # Padded rows/cols contribute exactly 0 (t == 0 there) -> no mask needed.
    part = jnp.sum(loss)

    @pl.when(pl.program_id(0) == 0)
    def _init():
        out_ref[0, 0] = jnp.float32(0.0)

    out_ref[0, 0] += part

    if scale != 1.0:
        @pl.when(pl.program_id(0) == pl.num_programs(0) - 1)
        def _finalize():
            out_ref[0, 0] = out_ref[0, 0] * jnp.float32(scale)


# ----------------------------------------------------------------------------
# Wrappers (layout / padding / pallas_call plumbing)
# ----------------------------------------------------------------------------
def _sigmoid_focal(inputs, targets, *, gamma, alpha, reduction, task_type,
                   max_tile_rows):
    orig_shape = inputs.shape

    if task_type == "binary":
        # Lane-dense layout: flatten and fold onto (rows, 128) instead of (1, B).
        n = int(inputs.size)
        lane_w = LANE
        rows = (n + lane_w - 1) // lane_w
        tile_rows, rows_pad = _choose_row_tiling(rows, lane_w, max_tile_rows)
        pad_len = rows_pad * lane_w - n
        x2 = jnp.pad(inputs.reshape(-1), (0, pad_len)).reshape(rows_pad, lane_w)
        t2 = jnp.pad(targets.reshape(-1), (0, pad_len)).reshape(rows_pad, lane_w)
        flat_count, valid_rows, valid_cols = n, None, None
        true_count = n
        needs_mask = (rows_pad * lane_w != n)
    else:  # multi-label
        x2 = inputs.reshape(-1, inputs.shape[-1])
        t2 = targets.reshape(-1, targets.shape[-1])
        b, c = x2.shape
        lane_w = _round_up(c, LANE)
        tile_rows, rows_pad = _choose_row_tiling(b, lane_w, max_tile_rows)
        x2 = _pad2d(x2, rows_pad, lane_w)
        t2 = _pad2d(t2, rows_pad, lane_w)
        flat_count, valid_rows, valid_cols = None, b, c
        true_count = b * c
        needs_mask = (rows_pad != b) or (lane_w != c)

    grid = (rows_pad // tile_rows,)
    alpha_s = None if alpha is None else float(alpha)
    in_specs = [pl.BlockSpec((tile_rows, lane_w), lambda i: (i, 0))] * 2
    common = dict(gamma=gamma, alpha=alpha_s, reduction=reduction,
                  tile_rows=tile_rows, lane_w=lane_w, flat_count=flat_count,
                  valid_rows=valid_rows, valid_cols=valid_cols)

    if reduction == "none":
        kernel = functools.partial(_sigmoid_focal_kernel, needs_mask=False,
                                   scale=1.0, **common)
        out = pl.pallas_call(
            kernel,
            out_shape=jax.ShapeDtypeStruct((rows_pad, lane_w), jnp.float32),
            grid=grid,
            in_specs=in_specs,
            out_specs=pl.BlockSpec((tile_rows, lane_w), lambda i: (i, 0)),
            compiler_params=pltpu.CompilerParams(
                dimension_semantics=("parallel",)),
        )(x2, t2)
        if task_type == "binary":
            return out.reshape(-1)[:true_count].reshape(orig_shape)
        return out[:valid_rows, :valid_cols].reshape(orig_shape)

    scale = (1.0 / true_count) if reduction == "mean" else 1.0
    kernel = functools.partial(_sigmoid_focal_kernel, needs_mask=needs_mask,
                               scale=scale, **common)
    out = pl.pallas_call(
        kernel,
        out_shape=jax.ShapeDtypeStruct((1, 1), jnp.float32),
        grid=grid,
        in_specs=in_specs,
        out_specs=pl.BlockSpec(memory_space=pltpu.MemorySpace.SMEM),
        compiler_params=pltpu.CompilerParams(
            dimension_semantics=("arbitrary",)),
    )(x2, t2)
    return out[0, 0]


def _multiclass_focal(inputs, targets, *, gamma, alpha, reduction,
                      max_tile_rows):
    # TODO(synk): for tiny class counts (C << 128) a transposed layout with B
    # on the lane axis would avoid the ~C/128 lane-padding waste.
    x2 = inputs
    t2 = targets
    b, c = x2.shape
    lane_w = _round_up(c, LANE)
    tile_rows, rows_pad = _choose_row_tiling(b, lane_w, max_tile_rows)

    # Pad logits with a large negative value so padded classes vanish from the
    # softmax; padded targets are 0 so padded elements contribute exactly 0.
    x2 = _pad2d(x2, rows_pad, lane_w, value=_NEG_BIG)
    t2 = _pad2d(t2, rows_pad, lane_w, value=0)

    use_alpha = alpha is not None
    operands = [x2, t2]
    in_specs = [pl.BlockSpec((tile_rows, lane_w), lambda i: (i, 0))] * 2
    if use_alpha:
        a2 = jnp.asarray(alpha, jnp.float32).reshape(1, c)
        a2 = _pad2d(a2, 1, lane_w, value=0)
        operands.append(a2)
        in_specs.append(pl.BlockSpec((1, lane_w), lambda i: (0, 0)))

    grid = (rows_pad // tile_rows,)
    common = dict(gamma=gamma, use_alpha=use_alpha, reduction=reduction)

    if reduction == "none":
        kernel = functools.partial(_multiclass_focal_kernel, scale=1.0,
                                   **common)
        out = pl.pallas_call(
            kernel,
            out_shape=jax.ShapeDtypeStruct((rows_pad, lane_w), jnp.float32),
            grid=grid,
            in_specs=in_specs,
            out_specs=pl.BlockSpec((tile_rows, lane_w), lambda i: (i, 0)),
            compiler_params=pltpu.CompilerParams(
                dimension_semantics=("parallel",)),
        )(*operands)
        return out[:b, :c]

    scale = (1.0 / (b * c)) if reduction == "mean" else 1.0
    kernel = functools.partial(_multiclass_focal_kernel, scale=scale, **common)
    out = pl.pallas_call(
        kernel,
        out_shape=jax.ShapeDtypeStruct((1, 1), jnp.float32),
        grid=grid,
        in_specs=in_specs,
        out_specs=pl.BlockSpec(memory_space=pltpu.MemorySpace.SMEM),
        compiler_params=pltpu.CompilerParams(
            dimension_semantics=("arbitrary",)),
    )(*operands)
    return out[0, 0]


def focal_loss(inputs, targets, *, gamma=2.0, alpha=None, reduction="mean",
               task_type="binary", num_classes=None,
               max_tile_rows=_DEFAULT_TILE_ROWS):
    """Unified focal loss matching the PyTorch FocalLoss forward pass."""
    del num_classes  # kept for API parity with the torch module
    if reduction not in ("none", "mean", "sum"):
        raise ValueError(f"Unsupported reduction '{reduction}'.")
    gamma = float(gamma)

    if task_type in ("binary", "multi-label"):
        return _sigmoid_focal(inputs, targets, gamma=gamma, alpha=alpha,
                              reduction=reduction, task_type=task_type,
                              max_tile_rows=max_tile_rows)
    if task_type == "multi-class":
        return _multiclass_focal(inputs, targets, gamma=gamma, alpha=alpha,
                                 reduction=reduction,
                                 max_tile_rows=max_tile_rows)
    raise ValueError(f"Unsupported task_type '{task_type}'. Use 'binary', "
                     "'multi-class', or 'multi-label'.")


# ----------------------------------------------------------------------------
# Pure-JAX references (for checking the kernels)
# ----------------------------------------------------------------------------
def _ref_sigmoid_focal(x, t, gamma, alpha, reduction):
    x = x.astype(jnp.float32)
    t = t.astype(jnp.float32)
    probs = jax.nn.sigmoid(x)
    bce = jnp.maximum(x, 0.0) - x * t + jnp.log1p(jnp.exp(-jnp.abs(x)))
    p_t = probs * t + (1 - probs) * (1 - t)
    fw = (1 - p_t) ** gamma
    if alpha is not None:
        bce = (alpha * t + (1 - alpha) * (1 - t)) * bce
    loss = fw * bce
    return {"mean": loss.mean(), "sum": loss.sum()}.get(reduction, loss)


def _ref_multiclass_focal(x, t, gamma, alpha, reduction):
    x = x.astype(jnp.float32)
    t = t.astype(jnp.float32)
    logp = jax.nn.log_softmax(x, axis=1)
    probs = jnp.exp(logp)
    ce = -t * logp
    p_t = jnp.sum(probs * t, axis=1)
    fw = (1 - p_t) ** gamma
    if alpha is not None:
        a = jnp.asarray(alpha, jnp.float32)
        alpha_t = a[jnp.argmax(t, axis=1)]
        ce = alpha_t[:, None] * ce
    loss = fw[:, None] * ce
    return {"mean": loss.mean(), "sum": loss.sum()}.get(reduction, loss)


# ----------------------------------------------------------------------------
# Demo
# ----------------------------------------------------------------------------
if __name__ == "__main__":
    key = jax.random.PRNGKey(0)
    ks = jax.random.split(key, 10)
    gamma = 2.0
    C = 4

    # 1) binary, scalar alpha, mean, ragged size (exercises flat tail mask)
    Bb = 37
    x_bin = jax.random.normal(ks[0], (Bb,), jnp.float32)
    t_bin = jax.random.bernoulli(ks[1], 0.5, (Bb,)).astype(jnp.float32)
    out_bin = focal_loss(x_bin, t_bin, gamma=gamma, alpha=0.25,
                         reduction="mean", task_type="binary")
    ref_bin = _ref_sigmoid_focal(x_bin, t_bin, gamma, 0.25, "mean")

    # 2) multi-class, per-class alpha, mean (lane padding C=4 -> 128)
    B = 8
    x_mc = jax.random.normal(ks[2], (B, C), jnp.float32)
    labels = jax.random.randint(ks[3], (B,), 0, C)
    t_mc = jax.nn.one_hot(labels, C, dtype=jnp.float32)
    alpha_mc = [0.1, 0.2, 0.3, 0.4]
    out_mc = focal_loss(x_mc, t_mc, gamma=gamma, alpha=alpha_mc,
                        reduction="mean", task_type="multi-class",
                        num_classes=C)
    ref_mc = _ref_multiclass_focal(x_mc, t_mc, gamma, alpha_mc, "mean")

    # 3) multi-class, no alpha, reduction='none'
    out_mc_n = focal_loss(x_mc, t_mc, gamma=gamma, alpha=None,
                          reduction="none", task_type="multi-class")
    ref_mc_n = _ref_multiclass_focal(x_mc, t_mc, gamma, None, "none")

    # 4) multi-label, scalar alpha, reduction='none'
    x_ml = jax.random.normal(ks[4], (B, C), jnp.float32)
    t_ml = jax.random.bernoulli(ks[5], 0.5, (B, C)).astype(jnp.float32)
    out_ml = focal_loss(x_ml, t_ml, gamma=gamma, alpha=0.75,
                        reduction="none", task_type="multi-label")
    ref_ml = _ref_sigmoid_focal(x_ml, t_ml, gamma, 0.75, "none")

    # 5) multi-label, no alpha, sum over a multi-tile grid (forced small tiles)
    B2 = 40
    x_ml2 = jax.random.normal(ks[6], (B2, C), jnp.float32)
    t_ml2 = jax.random.bernoulli(ks[7], 0.5, (B2, C)).astype(jnp.float32)
    out_ml2 = focal_loss(x_ml2, t_ml2, gamma=gamma, alpha=None,
                         reduction="sum", task_type="multi-label",
                         max_tile_rows=8)
    ref_ml2 = _ref_sigmoid_focal(x_ml2, t_ml2, gamma, None, "sum")

    # 6) bf16 inputs, multi-label mean (dtype passthrough, cast in-kernel)
    x_bf = jax.random.normal(ks[8], (16, C), jnp.float32).astype(jnp.bfloat16)
    t_bf = jax.random.bernoulli(ks[9], 0.5, (16, C)).astype(jnp.bfloat16)
    out_bf = focal_loss(x_bf, t_bf, gamma=gamma, alpha=0.5,
                        reduction="mean", task_type="multi-label")
    ref_bf = _ref_sigmoid_focal(x_bf.astype(jnp.float32),
                                t_bf.astype(jnp.float32), gamma, 0.5, "mean")

    results = (out_bin, out_mc, out_mc_n, out_ml, out_ml2, out_bf)
    jax.block_until_ready(results)

    assert jnp.allclose(out_bin, ref_bin, atol=1e-5, rtol=1e-5)
    assert jnp.allclose(out_mc, ref_mc, atol=1e-5, rtol=1e-5)
    assert jnp.allclose(out_mc_n, ref_mc_n, atol=1e-5, rtol=1e-5)
    assert jnp.allclose(out_ml, ref_ml, atol=1e-5, rtol=1e-5)
    assert jnp.allclose(out_ml2, ref_ml2, atol=1e-5, rtol=1e-5)
    assert jnp.allclose(out_bf, ref_bf, atol=1e-5, rtol=1e-5)

    print("KERNEL_OK")
</pallas_src>

<mosaic_0001>
module attributes {stable_mosaic.version = 11 : i64} {
  func.func @_sigmoid_focal_kernel(%arg0: i32, %arg1: memref<8x128xf32, #tpu.memory_space<vmem>>, %arg2: memref<8x128xf32, #tpu.memory_space<vmem>>, %arg3: memref<1x1xf32, #tpu.memory_space<smem>>) attributes {dimension_semantics = [#tpu.dimension_semantics<arbitrary>], iteration_bounds = array<i64: 1>, scalar_prefetch = 0 : i64, scratch_operands = 0 : i64, tpu.core_type = #tpu.core_type<tc>, window_params = [{transform_indices = @transform_0, window_bounds = array<i64: 8, 128>}, {transform_indices = @transform_1, window_bounds = array<i64: 8, 128>}, {transform_indices = @transform_2, window_bounds = array<i64: 1, 1>}]} {
    %c0 = arith.constant 0 : index
    %c0_0 = arith.constant 0 : index
    %0 = vector.load %arg1[%c0, %c0_0] : memref<8x128xf32, #tpu.memory_space<vmem>>, vector<8x128xf32>
    %c0_1 = arith.constant 0 : index
    %c0_2 = arith.constant 0 : index
    %1 = vector.load %arg2[%c0_1, %c0_2] : memref<8x128xf32, #tpu.memory_space<vmem>>, vector<8x128xf32>
    %2 = math.absf %0 : vector<8x128xf32>
    %cst = arith.constant 0.000000e+00 : f32
    %3 = vector.broadcast %cst : f32 to vector<8x128xf32>
    %4 = arith.subf %3, %2 : vector<8x128xf32>
    %5 = math.exp %4 : vector<8x128xf32>
    %cst_3 = arith.constant 1.000000e+00 : f32
    %6 = vector.broadcast %cst_3 : f32 to vector<8x128xf32>
    %7 = arith.addf %6, %5 : vector<8x128xf32>
    %8 = tpu.reciprocal %7 : vector<8x128xf32> -> vector<8x128xf32>
    %cst_4 = arith.constant 0.000000e+00 : f32
    %9 = vector.broadcast %cst_4 : f32 to vector<8x128xf32>
    %10 = arith.cmpf oge, %0, %9 : vector<8x128xf32>
    %11 = arith.mulf %5, %8 : vector<8x128xf32>
    %12 = arith.select %10, %8, %11 : vector<8x128xi1>, vector<8x128xf32>
    %cst_5 = arith.constant 0.000000e+00 : f32
    %13 = vector.broadcast %cst_5 : f32 to vector<8x128xf32>
    %14 = arith.maximumf %0, %13 : vector<8x128xf32>
    %15 = arith.mulf %0, %1 : vector<8x128xf32>
    %16 = arith.subf %14, %15 : vector<8x128xf32>
    %17 = math.log1p %5 : vector<8x128xf32>
    %18 = arith.addf %16, %17 : vector<8x128xf32>
    %19 = arith.mulf %12, %1 : vector<8x128xf32>
    %cst_6 = arith.constant 1.000000e+00 : f32
    %20 = vector.broadcast %cst_6 : f32 to vector<8x128xf32>
    %21 = arith.subf %20, %12 : vector<8x128xf32>
    %cst_7 = arith.constant 1.000000e+00 : f32
    %22 = vector.broadcast %cst_7 : f32 to vector<8x128xf32>
    %23 = arith.subf %22, %1 : vector<8x128xf32>
    %24 = arith.mulf %21, %23 : vector<8x128xf32>
    %25 = arith.addf %19, %24 : vector<8x128xf32>
    %cst_8 = arith.constant 1.000000e+00 : f32
    %26 = vector.broadcast %cst_8 : f32 to vector<8x128xf32>
    %27 = arith.subf %26, %25 : vector<8x128xf32>
    %28 = arith.mulf %27, %27 : vector<8x128xf32>
    %cst_9 = arith.constant 2.500000e-01 : f32
    %29 = vector.broadcast %cst_9 : f32 to vector<8x128xf32>
    %30 = arith.mulf %29, %1 : vector<8x128xf32>
    %cst_10 = arith.constant 1.000000e+00 : f32
    %31 = vector.broadcast %cst_10 : f32 to vector<8x128xf32>
    %32 = arith.subf %31, %1 : vector<8x128xf32>
    %cst_11 = arith.constant 7.500000e-01 : f32
    %33 = vector.broadcast %cst_11 : f32 to vector<8x128xf32>
    %34 = arith.mulf %33, %32 : vector<8x128xf32>
    %35 = arith.addf %30, %34 : vector<8x128xf32>
    %36 = arith.mulf %35, %18 : vector<8x128xf32>
    %37 = arith.mulf %28, %36 : vector<8x128xf32>
    %c8_i32 = arith.constant 8 : i32
    %38 = arith.muli %arg0, %c8_i32 : i32
    %39 = tpu.iota {dimensions = array<i32: 0>} : vector<8x128xi32>
    %40 = vector.broadcast %38 : i32 to vector<8x128xi32>
    %41 = arith.addi %39, %40 : vector<8x128xi32>
    %42 = tpu.iota {dimensions = array<i32: 1>} : vector<8x128xi32>
    %c128_i32 = arith.constant 128 : i32
    %43 = vector.broadcast %c128_i32 : i32 to vector<8x128xi32>
    %44 = arith.muli %41, %43 : vector<8x128xi32>
    %45 = arith.addi %44, %42 : vector<8x128xi32>
    %c37_i32 = arith.constant 37 : i32
    %46 = vector.broadcast %c37_i32 : i32 to vector<8x128xi32>
    %47 = arith.cmpi slt, %45, %46 : vector<8x128xi32>
    %cst_12 = arith.constant 0.000000e+00 : f32
    %48 = vector.broadcast %cst_12 : f32 to vector<8x128xf32>
    %49 = arith.select %47, %37, %48 : vector<8x128xi1>, vector<8x128xf32>
    %50 = vector.shape_cast %49 : vector<8x128xf32> to vector<1x8x128xf32>
    %cst_13 = arith.constant dense<0.000000e+00> : vector<1xf32>
    %51 = vector.multi_reduction <add>, %50, %cst_13 [1, 2] : vector<1x8x128xf32> to vector<1xf32>
    %52 = vector.shape_cast %51 : vector<1xf32> to vector<1x1x1xf32>
    %53 = vector.extract %52[0, 0, 0] : f32 from vector<1x1x1xf32>
    %c0_i32 = arith.constant 0 : i32
    %54 = arith.cmpi eq, %arg0, %c0_i32 : i32
    %55 = arith.extui %54 : i1 to i32
    %c0_i32_14 = arith.constant 0 : i32
    %56 = arith.cmpi ne, %55, %c0_i32_14 : i32
    scf.if %56 {
      %cst_21 = arith.constant 0.000000e+00 : f32
      %c0_22 = arith.constant 0 : index
      %c0_23 = arith.constant 0 : index
      %63 = memref.load %arg3[%c0_22, %c0_23] : memref<1x1xf32, #tpu.memory_space<smem>>
      memref.store %cst_21, %arg3[%c0_22, %c0_23] : memref<1x1xf32, #tpu.memory_space<smem>>
    } else {
    }
    %c0_15 = arith.constant 0 : index
    %c0_16 = arith.constant 0 : index
    %57 = memref.load %arg3[%c0_15, %c0_16] : memref<1x1xf32, #tpu.memory_space<smem>>
    %58 = arith.addf %57, %53 : f32
    %c0_17 = arith.constant 0 : index
    %c0_18 = arith.constant 0 : index
    %59 = memref.load %arg3[%c0_17, %c0_18] : memref<1x1xf32, #tpu.memory_space<smem>>
    memref.store %58, %arg3[%c0_17, %c0_18] : memref<1x1xf32, #tpu.memory_space<smem>>
    %c0_i32_19 = arith.constant 0 : i32
    %60 = arith.cmpi eq, %arg0, %c0_i32_19 : i32
    %61 = arith.extui %60 : i1 to i32
    %c0_i32_20 = arith.constant 0 : i32
    %62 = arith.cmpi ne, %61, %c0_i32_20 : i32
    scf.if %62 {
      %c0_21 = arith.constant 0 : index
      %c0_22 = arith.constant 0 : index
      %63 = memref.load %arg3[%c0_21, %c0_22] : memref<1x1xf32, #tpu.memory_space<smem>>
      %cst_23 = arith.constant 0.0270270277 : f32
      %64 = arith.mulf %63, %cst_23 : f32
      %c0_24 = arith.constant 0 : index
      %c0_25 = arith.constant 0 : index
      %65 = memref.load %arg3[%c0_24, %c0_25] : memref<1x1xf32, #tpu.memory_space<smem>>
      memref.store %64, %arg3[%c0_24, %c0_25] : memref<1x1xf32, #tpu.memory_space<smem>>
    } else {
    }
    return
  }
  func.func @transform_0(%arg0: i32) -> (i32, i32) {
    %c0_i32 = arith.constant 0 : i32
    %c0_i32_0 = arith.constant 0 : i32
    return %arg0, %c0_i32 : i32, i32
  }
  func.func @transform_1(%arg0: i32) -> (i32, i32) {
    %c0_i32 = arith.constant 0 : i32
    %c0_i32_0 = arith.constant 0 : i32
    return %arg0, %c0_i32 : i32, i32
  }
  func.func @transform_2(%arg0: i32) -> (i32, i32) {
    %c0_i32 = arith.constant 0 : i32
    %c0_i32_0 = arith.constant 0 : i32
    %c0_i32_1 = arith.constant 0 : i32
    return %c0_i32, %c0_i32_0 : i32, i32
  }
}

</mosaic_0001>

<llo_original>
// kernel: tpu_custom_call.1
$region0: #{tpu_custom_call.1}
  #allocation0 [shape = 'u32[]', space=smem, size = 0x4, offset = 0x4, fixed_abs, tag = 'smem constant byte address 0x4 - core index']
  #allocation1 [shape = 'u32[72,128]{1,0:T(1,128)}', space=vmem, size = 0x9000, scoped, tag = 'internal scratch']
  %s0 = inlined_call_operand.hbm [shape: f32[8,128], index: 0, kind: input, shape index: {}]
  %s1 = inlined_call_operand.hbm [shape: f32[8,128], index: 1, kind: input, shape index: {}]
  %s2 = inlined_call_operand.hbm [shape: f32[1,1], index: 2, kind: output, shape index: {}]
  %s3 = sld [smem:[#allocation0]]
  $region34: #{tpu_custom_call.1} parent=0
    _
  %s5 = ssub.s32 1, %s3
  %s6 = scalar_select 0, %s5, %s3
  $region1: #{tpu_custom_call.1} parent=0
    #allocation2 [shape = 'u8[4096]{0}', space=vmem, size = 0x1000, scoped, tag = 'input window, operand 0, single buffered']
    #allocation3 [shape = 's32[1]{0}', space=sflag, size = 0x4, scoped, tag = 'scoped memory for tpu_custom_call.1']
    #allocation4 [shape = 's32[1]{0}', space=sflag, size = 0x4, scoped, tag = 'scoped memory for tpu_custom_call.1']
    #allocation5 [shape = 'u8[4096]{0}', space=vmem, size = 0x1000, scoped, tag = 'input window, operand 1, single buffered']
    #allocation6 [shape = 's32[1]{0}', space=sflag, size = 0x4, scoped, tag = 'scoped memory for tpu_custom_call.1']
    #allocation7 [shape = 'u8[512]{0}', space=smem, size = 0x200, scoped, tag = 'output window, operand 0, single buffered']
    %7 = vsyncpa [#allocation3], 0
    %8 = vsyncpa [#allocation6], 0
    %9 = vsyncpa [#allocation4], 0
    // Predicated region
    $region2: #{tpu_custom_call.1} parent=1 // pred_check
      _
    $region3: #{tpu_custom_call.1} parent=1 // pred_check_branch
      %11 = sbr.rel (0) target = $region5
    $region4: #{tpu_custom_call.1} parent=1 // pred_region
      %13 = vsyncadd [#allocation3], 0
      %s15 = sshll.u32 %s0, 4
      %s16 = int_to_ptr.hbm [resolvable:$true] %s15
      %s17 = sshll.u32 [#allocation2], 4
      %s18 = int_to_ptr.vmem [resolvable:$true] %s17
      %20 = dma.hbm_to_vmem [thread:$0]  %s16, 128, %s18, [#allocation3]
    $region5: #{tpu_custom_call.1} parent=1 // pred_fallthru
      _
    // Predicated region
    $region6: #{tpu_custom_call.1} parent=1 // pred_check
      _
    $region7: #{tpu_custom_call.1} parent=1 // pred_check_branch
      %22 = sbr.rel (0) target = $region9
    $region8: #{tpu_custom_call.1} parent=1 // pred_region
      %24 = vsyncadd [#allocation6], 0
      %s26 = sshll.u32 %s1, 4
      %s27 = int_to_ptr.hbm [resolvable:$true] %s26
      %s28 = sshll.u32 [#allocation5], 4
      %s29 = int_to_ptr.vmem [resolvable:$true] %s28
      %31 = dma.hbm_to_vmem [thread:$0]  %s27, 128, %s29, [#allocation6]
    $region9: #{tpu_custom_call.1} parent=1 // pred_fallthru
      _
    // Predicated region
    $region10: #{tpu_custom_call.1} parent=1 // pred_check
      _
    $region11: #{tpu_custom_call.1} parent=1 // pred_check_branch
      %33 = sbr.rel (0) target = $region13
    $region12: #{tpu_custom_call.1} parent=1 // pred_region
      %35 = dma.done [#allocation3], 128
    $region13: #{tpu_custom_call.1} parent=1 // pred_fallthru
      _
    // Predicated region
    $region14: #{tpu_custom_call.1} parent=1 // pred_check
      _
    $region15: #{tpu_custom_call.1} parent=1 // pred_check_branch
      %37 = sbr.rel (0) target = $region17
    $region16: #{tpu_custom_call.1} parent=1 // pred_region
      %39 = dma.done [#allocation6], 128
    $region17: #{tpu_custom_call.1} parent=1 // pred_fallthru
      _
    %v40 = vld [vmem:[#allocation2] sm:$0xff]
    %v41 = vld [vmem:[#allocation5] sm:$0xff]
    %v42 = vand.u32 2147483647, %v40
    %v43 = vsub.f32 0.0, %v42
    %v44 = vmul.f32 %v43, 1.442695
    %v45 = vpow.pop %v44
    %v46 = vadd.f32 %v45, 1.0
    %v47 = vrcp.pop %v46
    %v48 = vmul.f32 %v46, %v47
    %v49 = vsub.f32 1.0, %v48
    %v50 = vmul.f32 %v47, %v49
    %v51 = vadd.f32 %v47, %v50
    %vm52 = vweird.f32 %v46
    %vm53 = vweird.f32 %v47
    %vm54 = vmor %vm52, %vm53
    %v55 = vsel %vm54, %v47, %v51
    %v56 = vand.u32 2147483647, %v46
    %vm57 = vcmp.eq.f32.partialorder %v56, 8.507059e+37
    %v58 = vand.u32 %v46, 2147483648
    %v59 = vor.u32 1.1754944e-38, %v58
    %v60 = vsel %vm57, %v59, %v55
    %vm61 = vcmp.ge.f32.partialorder %v40, 0.0
    %v62 = vmul.f32 %v45, %v60
    %v63 = vsel %vm61, %v60, %v62
    %v64 = vmax.f32 %v40, 0.0
    %v65 = vmul.f32 %v40, %v41
    %v66 = vsub.f32 %v64, %v65
    %v67 = vadd.f32 %v45, 1.0
    %v68 = vlog2.pop %v67
    %v69 = vmul.f32 %v68, 0.6931472
    %v70 = vmul.f32 -0.5, %v45
    %v71 = vadd.f32 %v70, 1.0
    %v72 = vmul.f32 %v71, %v45
    %v73 = vand.u32 2147483647, %v45
    %vm74 = vcmp.lt.f32.partialorder %v73, 0.0004427343
    %v75 = vsel %vm74, %v72, %v69
    %v76 = vadd.f32 %v66, %v75
    %v77 = vmul.f32 %v63, %v41
    %v78 = vsub.f32 1.0, %v63
    %v79 = vsub.f32 1.0, %v41
    %v80 = vmul.f32 %v78, %v79
    %v81 = vadd.f32 %v77, %v80
    %v82 = vsub.f32 1.0, %v81
    %v83 = vmul.f32 %v82, %v82
    %v84 = vmul.f32 %v41, 0.25
    %v85 = vmul.f32 %v79, 0.75
    %v86 = vadd.f32 %v84, %v85
    %v87 = vmul.f32 %v86, %v76
    %v88 = vmul.f32 %v83, %v87
    %s89 = smul.u32 0, 8
    %v90 = vlaneseq
    %v91 = vshrl.u32 %v90, 7
    %v92 = vstv %s89
    %v93 = vadd.s32 %v91, %v92
    %v94 = vlaneseq
    %v95 = vand.u32 %v94, 127
    %v96 = vmul.u32 %v93, 128
    %v97 = vadd.s32 %v96, %v95
    %vm98 = vcmp.lt.s32.totalorder %v97, 37
    %v99 = vsel %vm98, %v88, 0.0
    %100 = vadd.xlane.f32.xlu0 %v99
    %v101 = vpop.xlane.xlu0 %100
    %v102 = vrot.slane %v101, 4
    %v103 = vadd.f32 %v101, %v102
    %v104 = vrot.slane %v103, 2
    %v105 = vadd.f32 %v103, %v104
    %v106 = vrot.slane %v105, 1
    %v107 = vadd.f32 %v105, %v106
    %s108 = vtos %v107
    %p109 = scmp.eq.s32.totalorder 0, 0
    // Predicated region
    $region18: #{tpu_custom_call.1} parent=1 // pred_check
      %p110 = pneg %p109
    $region19: #{tpu_custom_call.1} parent=1 // pred_check_branch
      %112 = sbr.rel (%p110) target = $region21
    $region20: #{tpu_custom_call.1} parent=1 // pred_region
      %s113 = scalar_lea.smem [#allocation7], 0
      %114 = sst [smem:[%s113]] 0.0
    $region21: #{tpu_custom_call.1} parent=1 // pred_fallthru
      _
    %s115 = sld [smem:[#allocation7]]
    %s116 = sadd.f32 %s115, %s108
    %s117 = scalar_lea.smem [#allocation7], 0
    %118 = sst [smem:[%s117]] %s116
    // Predicated region
    $region22: #{tpu_custom_call.1} parent=1 // pred_check
      %p119 = pneg %p109
    $region23: #{tpu_custom_call.1} parent=1 // pred_check_branch
      %121 = sbr.rel (%p119) target = $region25
    $region24: #{tpu_custom_call.1} parent=1 // pred_region
      %s122 = sld [smem:[#allocation7]]
      %s123 = smul.f32 %s122, 0.027027028
      %124 = sst [smem:[%s117]] %s123
    $region25: #{tpu_custom_call.1} parent=1 // pred_fallthru
      _
    // Predicated region
    $region26: #{tpu_custom_call.1} parent=1 // pred_check
      _
    $region27: #{tpu_custom_call.1} parent=1 // pred_check_branch
      %126 = sbr.rel (0) target = $region29
    $region28: #{tpu_custom_call.1} parent=1 // pred_region
      %128 = vsyncadd [#allocation4], 0
      %s130 = sshll.u32 %s2, 4
      %s131 = int_to_ptr.hbm [resolvable:$true] %s130
      %133 = dma.smem_to_hbm [#allocation7], 16, %s131, [#allocation4]
    $region29: #{tpu_custom_call.1} parent=1 // pred_fallthru
      _
    // Predicated region
    $region30: #{tpu_custom_call.1} parent=1 // pred_check
      _
    $region31: #{tpu_custom_call.1} parent=1 // pred_check_branch
      %135 = sbr.rel (0) target = $region33
    $region32: #{tpu_custom_call.1} parent=1 // pred_region
      %137 = dma.done [#allocation4], 16
    $region33: #{tpu_custom_call.1} parent=1 // pred_fallthru
      _
    %138 = sfence
    %139 = vsyncpa [#allocation3], 1
    %140 = vsyncpa [#allocation6], 1
    %141 = vsyncpa [#allocation4], 1

</llo_original>
